<compile_context>
chip_gen: v7x
topology: tpu7x:2x2x1
jax: 0.10.0
libtpu: 0.0.40
codegen_flags: <defaults>
</compile_context>

<pallas_src>
import functools

import jax
import jax.numpy as jnp
import numpy as np
from jax.experimental import pallas as pl
from jax.experimental.pallas import tpu as pltpu

EPS = 1e-07  # unused for default config (phase_transform=False)


# ----------------------------- constant setup (host) -----------------------------

def hann_window_np(n):
    # torch.hann_window(n), periodic=True: 0.5 * (1 - cos(2*pi*k/n))
    return 0.5 - 0.5 * np.cos(2.0 * np.pi * np.arange(n) / float(n))


def windowed_dft_matrix(n_dft):
    """[cos | -sin] onesided DFT basis for f = 1..n_dft//2 (DC dropped),
    with the hann window folded in.  Shape (n_dft, 2*Ff), float32."""
    Ff = n_dft // 2
    n = np.arange(n_dft, dtype=np.float64)[:, None]
    f = np.arange(1, Ff + 1, dtype=np.float64)[None, :]
    ang = 2.0 * np.pi * n * f / float(n_dft)
    basis = np.concatenate([np.cos(ang), -np.sin(ang)], axis=1)  # (N, 2*Ff)
    basis *= hann_window_np(n_dft)[:, None]
    return jnp.asarray(basis, dtype=jnp.float32)


def frame_signal(x_flat, n_dft, hop):
    """x_flat: (BC, time) -> reflect-padded frames (BC, n_frames, n_dft).
    Matches torch.stft(center=True, pad_mode='reflect')."""
    pad = n_dft // 2
    xp = jnp.pad(x_flat, ((0, 0), (pad, pad)), mode="reflect")
    n_frames = 1 + x_flat.shape[1] // hop
    idx = jnp.arange(n_frames)[:, None] * hop + jnp.arange(n_dft)[None, :]
    return xp[:, idx]  # (BC, n_frames, n_dft)


# ----------------------------- fused Pallas kernel -----------------------------

def _make_fused_kernel(bb, C, Tpad, Ff):
    two_ff = 2 * Ff

    def kernel(frames_ref, wdft_ref, out_ref):
        # frames_ref: (1, bb*C*Tpad, N)   wdft_ref: (N, 2*Ff)
        # out_ref:    (1, bb*Tpad, C*C*2*Ff)  -- lane-dense slab, full Tpad rows.
        # One MXU matmul over all batches/channels/frames of this grid block.
        # Columns [0:Ff] = Re(STFT), [Ff:2Ff] = Im(STFT) (window + DC-drop folded).
        s = jnp.dot(frames_ref[0], wdft_ref[...],
                    preferred_element_type=jnp.float32)       # (bb*C*Tpad, 2*Ff)

        for b in range(bb):
            base = b * C * Tpad
            re = [s[base + c * Tpad: base + (c + 1) * Tpad, :Ff] for c in range(C)]
            im = [s[base + c * Tpad: base + (c + 1) * Tpad, Ff:] for c in range(C)]
            r0 = b * Tpad
            # Hermitian symmetry: compute each i <= j pair once and store both
            # (i,j) and (j,i) = conj immediately -> only one pair live at a time.
            for i in range(C):
                for j in range(i, C):
                    r = re[i] * re[j] + im[i] * im[j]
                    m = im[i] * re[j] - re[i] * im[j]
                    p = i * C + j
                    out_ref[0, r0:r0 + Tpad, p * two_ff:(p + 1) * two_ff] = (
                        jnp.concatenate([r, m], axis=-1))
                    if i != j:
                        q = j * C + i
                        out_ref[0, r0:r0 + Tpad, q * two_ff:(q + 1) * two_ff] = (
                            jnp.concatenate([r, -m], axis=-1))

    return kernel


def cross_spectra_forward(x, n_dft=32, hop_size=16):
    """CrossSpectra forward (default flags).
    x: (B, C, time) float32 -> complex64 (B, C, C, n_frames, n_dft//2)."""
    B, C, time_steps = x.shape
    Ff = n_dft // 2
    P = C * C

    # Framing (reflect pad) stays in XLA — negligible at these sizes.
    frames = frame_signal(x.reshape(B * C, time_steps), n_dft, hop_size)  # (BC, T, N)
    T = frames.shape[1]
    Tpad = ((T + 7) // 8) * 8  # sublane-align per-channel row blocks
    frames = frames.reshape(B, C, T, n_dft)
    if Tpad != T:
        frames = jnp.pad(frames, ((0, 0), (0, 0), (0, Tpad - T), (0, 0)))

    # Grid: 2-way "parallel" batch split when possible (both v7x TensorCores get
    # work); otherwise one block (best for single-TC v5e/v6e — no per-step cost).
    nb = 2 if (B % 2 == 0 and B >= 2) else 1
    bb = B // nb
    frames = frames.reshape(nb, bb * C * Tpad, n_dft)

    wdft = windowed_dft_matrix(n_dft)  # (N, 2*Ff) constant

    matmul_flops = 2 * B * C * Tpad * n_dft * (2 * Ff)
    pair_flops = 6 * B * P * Tpad * Ff
    bytes_accessed = (frames.size + wdft.size + nb * bb * Tpad * P * 2 * Ff) * 4
    cost = pl.CostEstimate(flops=matmul_flops + pair_flops, transcendentals=0,
                           bytes_accessed=bytes_accessed)

    kernel = _make_fused_kernel(bb, C, Tpad, Ff)
    slab = pl.pallas_call(
        kernel,
        out_shape=jax.ShapeDtypeStruct((nb, bb * Tpad, P * 2 * Ff), jnp.float32),
        grid=(nb,),
        in_specs=[pl.BlockSpec((1, bb * C * Tpad, n_dft), lambda g: (g, 0, 0)),
                  pl.BlockSpec((n_dft, 2 * Ff), lambda g: (0, 0))],
        out_specs=pl.BlockSpec((1, bb * Tpad, P * 2 * Ff), lambda g: (g, 0, 0)),
        compiler_params=pltpu.CompilerParams(dimension_semantics=("parallel",)),
        cost_estimate=cost,
    )(frames, wdft)

    # Layout plumbing in XLA: trim pad rows, split re/im, assemble complex.
    slab = slab.reshape(B, Tpad, P, 2, Ff)[:, :T]              # (B, T, P, 2, Ff)
    y = jax.lax.complex(slab[..., 0, :], slab[..., 1, :])      # (B, T, P, Ff)
    y = jnp.transpose(y, (0, 2, 1, 3)).reshape(B, C, C, T, Ff)
    # TODO(synk): phase_transform / phase_only / avg_dim / non-complex branches
    # of the module are off by default and not implemented.
    return y


# ----------------------------- reference (pure JAX) -----------------------------

def cross_spectra_ref(x, n_dft=32, hop_size=16):
    B, C, time_steps = x.shape
    frames = frame_signal(x.reshape(B * C, time_steps), n_dft, hop_size)
    win = jnp.asarray(hann_window_np(n_dft), dtype=jnp.float32)
    s = jnp.fft.rfft(frames * win, axis=-1)[..., 1:]   # onesided, drop DC
    s = s.reshape(B, C, s.shape[1], s.shape[2])
    return s[:, :, None] * jnp.conj(s[:, None, :])     # (B, C, C, T, F)


if __name__ == "__main__":
    key = jax.random.PRNGKey(0)
    B, C, time_steps = 2, 4, 128
    n_dft, hop = 32, 16

    x = jax.random.normal(key, (B, C, time_steps), dtype=jnp.float32)

    fwd = jax.jit(functools.partial(cross_spectra_forward, n_dft=n_dft, hop_size=hop))
    y = jax.block_until_ready(fwd(x))

    y_ref = cross_spectra_ref(x, n_dft=n_dft, hop_size=hop)
    # Tightened from 1e-2 -> 2e-3 (all-f32 path; headroom over MXU f32 rounding).
    np.testing.assert_allclose(np.asarray(y), np.asarray(y_ref), rtol=2e-3, atol=2e-3)

    assert y.shape == (B, C, C, 1 + time_steps // hop, n_dft // 2)
    assert y.dtype == jnp.complex64
    print("KERNEL_OK")
</pallas_src>

<mosaic_0001>
module attributes {stable_mosaic.version = 11 : i64} {
  func.func @kernel(%arg0: i32, %arg1: memref<1x64x32xf32, #tpu.memory_space<vmem>>, %arg2: memref<32x32xf32, #tpu.memory_space<vmem>>, %arg3: memref<1x16x512xf32, #tpu.memory_space<vmem>>) attributes {dimension_semantics = [#tpu.dimension_semantics<parallel>], iteration_bounds = array<i64: 2>, scalar_prefetch = 0 : i64, scratch_operands = 0 : i64, tpu.core_type = #tpu.core_type<tc>, window_params = [{transform_indices = @transform_0, window_bounds = array<i64: 1, 64, 32>}, {pipeline_mode = #tpu.pipeline_mode<synchronous>, transform_indices = @transform_1, window_bounds = array<i64: 32, 32>}, {transform_indices = @transform_2, window_bounds = array<i64: 1, 16, 512>}]} {
    %c0 = arith.constant 0 : index
    %c0_0 = arith.constant 0 : index
    %c0_1 = arith.constant 0 : index
    %0 = vector.load %arg1[%c0, %c0_0, %c0_1] : memref<1x64x32xf32, #tpu.memory_space<vmem>>, vector<1x64x32xf32>
    %1 = vector.shape_cast %0 : vector<1x64x32xf32> to vector<64x32xf32>
    %c0_2 = arith.constant 0 : index
    %c0_3 = arith.constant 0 : index
    %2 = vector.load %arg2[%c0_2, %c0_3] : memref<32x32xf32, #tpu.memory_space<vmem>>, vector<32x32xf32>
    %cst = arith.constant dense<0.000000e+00> : vector<64x32xf32>
    %3 = tpu.matmul %1, %2, %cst {dimension_numbers = #tpu.dot_dimension_numbers<[1], [0], [0], [1], [0, 0, 1, 1], [], []>} : vector<64x32xf32>, vector<32x32xf32>, vector<64x32xf32> -> vector<64x32xf32>
    %4 = vector.extract_strided_slice %3 {offsets = [0, 0], sizes = [16, 16], strides = [1, 1]} : vector<64x32xf32> to vector<16x16xf32>
    %5 = vector.extract_strided_slice %3 {offsets = [16, 0], sizes = [16, 16], strides = [1, 1]} : vector<64x32xf32> to vector<16x16xf32>
    %6 = vector.extract_strided_slice %3 {offsets = [32, 0], sizes = [16, 16], strides = [1, 1]} : vector<64x32xf32> to vector<16x16xf32>
    %7 = vector.extract_strided_slice %3 {offsets = [48, 0], sizes = [16, 16], strides = [1, 1]} : vector<64x32xf32> to vector<16x16xf32>
    %8 = vector.extract_strided_slice %3 {offsets = [0, 16], sizes = [16, 16], strides = [1, 1]} : vector<64x32xf32> to vector<16x16xf32>
    %9 = vector.extract_strided_slice %3 {offsets = [16, 16], sizes = [16, 16], strides = [1, 1]} : vector<64x32xf32> to vector<16x16xf32>
    %10 = vector.extract_strided_slice %3 {offsets = [32, 16], sizes = [16, 16], strides = [1, 1]} : vector<64x32xf32> to vector<16x16xf32>
    %11 = vector.extract_strided_slice %3 {offsets = [48, 16], sizes = [16, 16], strides = [1, 1]} : vector<64x32xf32> to vector<16x16xf32>
    %12 = arith.mulf %4, %4 : vector<16x16xf32>
    %13 = arith.mulf %8, %8 : vector<16x16xf32>
    %14 = arith.addf %12, %13 : vector<16x16xf32>
    %15 = arith.mulf %8, %4 : vector<16x16xf32>
    %16 = arith.mulf %4, %8 : vector<16x16xf32>
    %17 = arith.subf %15, %16 : vector<16x16xf32>
    %18 = tpu.concatenate %14, %17 in 1 : vector<16x16xf32>, vector<16x16xf32> -> vector<16x32xf32>
    %c0_4 = arith.constant 0 : index
    %c0_5 = arith.constant 0 : index
    %c0_6 = arith.constant 0 : index
    %19 = vector.load %arg3[%c0_4, %c0_5, %c0_6] : memref<1x16x512xf32, #tpu.memory_space<vmem>>, vector<1x16x32xf32>
    %20 = vector.shape_cast %19 : vector<1x16x32xf32> to vector<16x32xf32>
    %21 = vector.shape_cast %18 : vector<16x32xf32> to vector<1x16x32xf32>
    tpu.vector_store %arg3[%c0_4, %c0_5, %c0_6], %21 {strides = array<i32>} : memref<1x16x512xf32, #tpu.memory_space<vmem>>, vector<1x16x32xf32>,
    %22 = arith.mulf %4, %5 : vector<16x16xf32>
    %23 = arith.mulf %8, %9 : vector<16x16xf32>
    %24 = arith.addf %22, %23 : vector<16x16xf32>
    %25 = arith.mulf %8, %5 : vector<16x16xf32>
    %26 = arith.mulf %4, %9 : vector<16x16xf32>
    %27 = arith.subf %25, %26 : vector<16x16xf32>
    %28 = tpu.concatenate %24, %27 in 1 : vector<16x16xf32>, vector<16x16xf32> -> vector<16x32xf32>
    %c0_7 = arith.constant 0 : index
    %c0_8 = arith.constant 0 : index
    %c32 = arith.constant 32 : index
    %29 = vector.load %arg3[%c0_7, %c0_8, %c32] : memref<1x16x512xf32, #tpu.memory_space<vmem>>, vector<1x16x32xf32>
    %30 = vector.shape_cast %29 : vector<1x16x32xf32> to vector<16x32xf32>
    %31 = vector.shape_cast %28 : vector<16x32xf32> to vector<1x16x32xf32>
    tpu.vector_store %arg3[%c0_7, %c0_8, %c32], %31 {strides = array<i32>} : memref<1x16x512xf32, #tpu.memory_space<vmem>>, vector<1x16x32xf32>,
    %cst_9 = arith.constant 0.000000e+00 : f32
    %32 = vector.broadcast %cst_9 : f32 to vector<16x16xf32>
    %33 = arith.subf %32, %27 : vector<16x16xf32>
    %34 = tpu.concatenate %24, %33 in 1 : vector<16x16xf32>, vector<16x16xf32> -> vector<16x32xf32>
    %c0_10 = arith.constant 0 : index
    %c0_11 = arith.constant 0 : index
    %c128 = arith.constant 128 : index
    %35 = vector.load %arg3[%c0_10, %c0_11, %c128] : memref<1x16x512xf32, #tpu.memory_space<vmem>>, vector<1x16x32xf32>
    %36 = vector.shape_cast %35 : vector<1x16x32xf32> to vector<16x32xf32>
    %37 = vector.shape_cast %34 : vector<16x32xf32> to vector<1x16x32xf32>
    tpu.vector_store %arg3[%c0_10, %c0_11, %c128], %37 {strides = array<i32>} : memref<1x16x512xf32, #tpu.memory_space<vmem>>, vector<1x16x32xf32>,
    %38 = arith.mulf %4, %6 : vector<16x16xf32>
    %39 = arith.mulf %8, %10 : vector<16x16xf32>
    %40 = arith.addf %38, %39 : vector<16x16xf32>
    %41 = arith.mulf %8, %6 : vector<16x16xf32>
    %42 = arith.mulf %4, %10 : vector<16x16xf32>
    %43 = arith.subf %41, %42 : vector<16x16xf32>
    %44 = tpu.concatenate %40, %43 in 1 : vector<16x16xf32>, vector<16x16xf32> -> vector<16x32xf32>
    %c0_12 = arith.constant 0 : index
    %c0_13 = arith.constant 0 : index
    %c64 = arith.constant 64 : index
    %45 = vector.load %arg3[%c0_12, %c0_13, %c64] : memref<1x16x512xf32, #tpu.memory_space<vmem>>, vector<1x16x32xf32>
    %46 = vector.shape_cast %45 : vector<1x16x32xf32> to vector<16x32xf32>
    %47 = vector.shape_cast %44 : vector<16x32xf32> to vector<1x16x32xf32>
    tpu.vector_store %arg3[%c0_12, %c0_13, %c64], %47 {strides = array<i32>} : memref<1x16x512xf32, #tpu.memory_space<vmem>>, vector<1x16x32xf32>,
    %cst_14 = arith.constant 0.000000e+00 : f32
    %48 = vector.broadcast %cst_14 : f32 to vector<16x16xf32>
    %49 = arith.subf %48, %43 : vector<16x16xf32>
    %50 = tpu.concatenate %40, %49 in 1 : vector<16x16xf32>, vector<16x16xf32> -> vector<16x32xf32>
    %c0_15 = arith.constant 0 : index
    %c0_16 = arith.constant 0 : index
    %c256 = arith.constant 256 : index
    %51 = vector.load %arg3[%c0_15, %c0_16, %c256] : memref<1x16x512xf32, #tpu.memory_space<vmem>>, vector<1x16x32xf32>
    %52 = vector.shape_cast %51 : vector<1x16x32xf32> to vector<16x32xf32>
    %53 = vector.shape_cast %50 : vector<16x32xf32> to vector<1x16x32xf32>
    tpu.vector_store %arg3[%c0_15, %c0_16, %c256], %53 {strides = array<i32>} : memref<1x16x512xf32, #tpu.memory_space<vmem>>, vector<1x16x32xf32>,
    %54 = arith.mulf %4, %7 : vector<16x16xf32>
    %55 = arith.mulf %8, %11 : vector<16x16xf32>
    %56 = arith.addf %54, %55 : vector<16x16xf32>
    %57 = arith.mulf %8, %7 : vector<16x16xf32>
    %58 = arith.mulf %4, %11 : vector<16x16xf32>
    %59 = arith.subf %57, %58 : vector<16x16xf32>
    %60 = tpu.concatenate %56, %59 in 1 : vector<16x16xf32>, vector<16x16xf32> -> vector<16x32xf32>
    %c0_17 = arith.constant 0 : index
    %c0_18 = arith.constant 0 : index
    %c96 = arith.constant 96 : index
    %61 = vector.load %arg3[%c0_17, %c0_18, %c96] : memref<1x16x512xf32, #tpu.memory_space<vmem>>, vector<1x16x32xf32>
    %62 = vector.shape_cast %61 : vector<1x16x32xf32> to vector<16x32xf32>
    %63 = vector.shape_cast %60 : vector<16x32xf32> to vector<1x16x32xf32>
    tpu.vector_store %arg3[%c0_17, %c0_18, %c96], %63 {strides = array<i32>} : memref<1x16x512xf32, #tpu.memory_space<vmem>>, vector<1x16x32xf32>,
    %cst_19 = arith.constant 0.000000e+00 : f32
    %64 = vector.broadcast %cst_19 : f32 to vector<16x16xf32>
    %65 = arith.subf %64, %59 : vector<16x16xf32>
    %66 = tpu.concatenate %56, %65 in 1 : vector<16x16xf32>, vector<16x16xf32> -> vector<16x32xf32>
    %c0_20 = arith.constant 0 : index
    %c0_21 = arith.constant 0 : index
    %c384 = arith.constant 384 : index
    %67 = vector.load %arg3[%c0_20, %c0_21, %c384] : memref<1x16x512xf32, #tpu.memory_space<vmem>>, vector<1x16x32xf32>
    %68 = vector.shape_cast %67 : vector<1x16x32xf32> to vector<16x32xf32>
    %69 = vector.shape_cast %66 : vector<16x32xf32> to vector<1x16x32xf32>
    tpu.vector_store %arg3[%c0_20, %c0_21, %c384], %69 {strides = array<i32>} : memref<1x16x512xf32, #tpu.memory_space<vmem>>, vector<1x16x32xf32>,
    %70 = arith.mulf %5, %5 : vector<16x16xf32>
    %71 = arith.mulf %9, %9 : vector<16x16xf32>
    %72 = arith.addf %70, %71 : vector<16x16xf32>
    %73 = arith.mulf %9, %5 : vector<16x16xf32>
    %74 = arith.mulf %5, %9 : vector<16x16xf32>
    %75 = arith.subf %73, %74 : vector<16x16xf32>
    %76 = tpu.concatenate %72, %75 in 1 : vector<16x16xf32>, vector<16x16xf32> -> vector<16x32xf32>
    %c0_22 = arith.constant 0 : index
    %c0_23 = arith.constant 0 : index
    %c160 = arith.constant 160 : index
    %77 = vector.load %arg3[%c0_22, %c0_23, %c160] : memref<1x16x512xf32, #tpu.memory_space<vmem>>, vector<1x16x32xf32>
    %78 = vector.shape_cast %77 : vector<1x16x32xf32> to vector<16x32xf32>
    %79 = vector.shape_cast %76 : vector<16x32xf32> to vector<1x16x32xf32>
    tpu.vector_store %arg3[%c0_22, %c0_23, %c160], %79 {strides = array<i32>} : memref<1x16x512xf32, #tpu.memory_space<vmem>>, vector<1x16x32xf32>,
    %80 = arith.mulf %5, %6 : vector<16x16xf32>
    %81 = arith.mulf %9, %10 : vector<16x16xf32>
    %82 = arith.addf %80, %81 : vector<16x16xf32>
    %83 = arith.mulf %9, %6 : vector<16x16xf32>
    %84 = arith.mulf %5, %10 : vector<16x16xf32>
    %85 = arith.subf %83, %84 : vector<16x16xf32>
    %86 = tpu.concatenate %82, %85 in 1 : vector<16x16xf32>, vector<16x16xf32> -> vector<16x32xf32>
    %c0_24 = arith.constant 0 : index
    %c0_25 = arith.constant 0 : index
    %c192 = arith.constant 192 : index
    %87 = vector.load %arg3[%c0_24, %c0_25, %c192] : memref<1x16x512xf32, #tpu.memory_space<vmem>>, vector<1x16x32xf32>
    %88 = vector.shape_cast %87 : vector<1x16x32xf32> to vector<16x32xf32>
    %89 = vector.shape_cast %86 : vector<16x32xf32> to vector<1x16x32xf32>
    tpu.vector_store %arg3[%c0_24, %c0_25, %c192], %89 {strides = array<i32>} : memref<1x16x512xf32, #tpu.memory_space<vmem>>, vector<1x16x32xf32>,
    %cst_26 = arith.constant 0.000000e+00 : f32
    %90 = vector.broadcast %cst_26 : f32 to vector<16x16xf32>
    %91 = arith.subf %90, %85 : vector<16x16xf32>
    %92 = tpu.concatenate %82, %91 in 1 : vector<16x16xf32>, vector<16x16xf32> -> vector<16x32xf32>
    %c0_27 = arith.constant 0 : index
    %c0_28 = arith.constant 0 : index
    %c288 = arith.constant 288 : index
    %93 = vector.load %arg3[%c0_27, %c0_28, %c288] : memref<1x16x512xf32, #tpu.memory_space<vmem>>, vector<1x16x32xf32>
    %94 = vector.shape_cast %93 : vector<1x16x32xf32> to vector<16x32xf32>
    %95 = vector.shape_cast %92 : vector<16x32xf32> to vector<1x16x32xf32>
    tpu.vector_store %arg3[%c0_27, %c0_28, %c288], %95 {strides = array<i32>} : memref<1x16x512xf32, #tpu.memory_space<vmem>>, vector<1x16x32xf32>,
    %96 = arith.mulf %5, %7 : vector<16x16xf32>
    %97 = arith.mulf %9, %11 : vector<16x16xf32>
    %98 = arith.addf %96, %97 : vector<16x16xf32>
    %99 = arith.mulf %9, %7 : vector<16x16xf32>
    %100 = arith.mulf %5, %11 : vector<16x16xf32>
    %101 = arith.subf %99, %100 : vector<16x16xf32>
    %102 = tpu.concatenate %98, %101 in 1 : vector<16x16xf32>, vector<16x16xf32> -> vector<16x32xf32>
    %c0_29 = arith.constant 0 : index
    %c0_30 = arith.constant 0 : index
    %c224 = arith.constant 224 : index
    %103 = vector.load %arg3[%c0_29, %c0_30, %c224] : memref<1x16x512xf32, #tpu.memory_space<vmem>>, vector<1x16x32xf32>
    %104 = vector.shape_cast %103 : vector<1x16x32xf32> to vector<16x32xf32>
    %105 = vector.shape_cast %102 : vector<16x32xf32> to vector<1x16x32xf32>
    tpu.vector_store %arg3[%c0_29, %c0_30, %c224], %105 {strides = array<i32>} : memref<1x16x512xf32, #tpu.memory_space<vmem>>, vector<1x16x32xf32>,
    %cst_31 = arith.constant 0.000000e+00 : f32
    %106 = vector.broadcast %cst_31 : f32 to vector<16x16xf32>
    %107 = arith.subf %106, %101 : vector<16x16xf32>
    %108 = tpu.concatenate %98, %107 in 1 : vector<16x16xf32>, vector<16x16xf32> -> vector<16x32xf32>
    %c0_32 = arith.constant 0 : index
    %c0_33 = arith.constant 0 : index
    %c416 = arith.constant 416 : index
    %109 = vector.load %arg3[%c0_32, %c0_33, %c416] : memref<1x16x512xf32, #tpu.memory_space<vmem>>, vector<1x16x32xf32>
    %110 = vector.shape_cast %109 : vector<1x16x32xf32> to vector<16x32xf32>
    %111 = vector.shape_cast %108 : vector<16x32xf32> to vector<1x16x32xf32>
    tpu.vector_store %arg3[%c0_32, %c0_33, %c416], %111 {strides = array<i32>} : memref<1x16x512xf32, #tpu.memory_space<vmem>>, vector<1x16x32xf32>,
    %112 = arith.mulf %6, %6 : vector<16x16xf32>
    %113 = arith.mulf %10, %10 : vector<16x16xf32>
    %114 = arith.addf %112, %113 : vector<16x16xf32>
    %115 = arith.mulf %10, %6 : vector<16x16xf32>
    %116 = arith.mulf %6, %10 : vector<16x16xf32>
    %117 = arith.subf %115, %116 : vector<16x16xf32>
    %118 = tpu.concatenate %114, %117 in 1 : vector<16x16xf32>, vector<16x16xf32> -> vector<16x32xf32>
    %c0_34 = arith.constant 0 : index
    %c0_35 = arith.constant 0 : index
    %c320 = arith.constant 320 : index
    %119 = vector.load %arg3[%c0_34, %c0_35, %c320] : memref<1x16x512xf32, #tpu.memory_space<vmem>>, vector<1x16x32xf32>
    %120 = vector.shape_cast %119 : vector<1x16x32xf32> to vector<16x32xf32>
    %121 = vector.shape_cast %118 : vector<16x32xf32> to vector<1x16x32xf32>
    tpu.vector_store %arg3[%c0_34, %c0_35, %c320], %121 {strides = array<i32>} : memref<1x16x512xf32, #tpu.memory_space<vmem>>, vector<1x16x32xf32>,
    %122 = arith.mulf %6, %7 : vector<16x16xf32>
    %123 = arith.mulf %10, %11 : vector<16x16xf32>
    %124 = arith.addf %122, %123 : vector<16x16xf32>
    %125 = arith.mulf %10, %7 : vector<16x16xf32>
    %126 = arith.mulf %6, %11 : vector<16x16xf32>
    %127 = arith.subf %125, %126 : vector<16x16xf32>
    %128 = tpu.concatenate %124, %127 in 1 : vector<16x16xf32>, vector<16x16xf32> -> vector<16x32xf32>
    %c0_36 = arith.constant 0 : index
    %c0_37 = arith.constant 0 : index
    %c352 = arith.constant 352 : index
    %129 = vector.load %arg3[%c0_36, %c0_37, %c352] : memref<1x16x512xf32, #tpu.memory_space<vmem>>, vector<1x16x32xf32>
    %130 = vector.shape_cast %129 : vector<1x16x32xf32> to vector<16x32xf32>
    %131 = vector.shape_cast %128 : vector<16x32xf32> to vector<1x16x32xf32>
    tpu.vector_store %arg3[%c0_36, %c0_37, %c352], %131 {strides = array<i32>} : memref<1x16x512xf32, #tpu.memory_space<vmem>>, vector<1x16x32xf32>,
    %cst_38 = arith.constant 0.000000e+00 : f32
    %132 = vector.broadcast %cst_38 : f32 to vector<16x16xf32>
    %133 = arith.subf %132, %127 : vector<16x16xf32>
    %134 = tpu.concatenate %124, %133 in 1 : vector<16x16xf32>, vector<16x16xf32> -> vector<16x32xf32>
    %c0_39 = arith.constant 0 : index
    %c0_40 = arith.constant 0 : index
    %c448 = arith.constant 448 : index
    %135 = vector.load %arg3[%c0_39, %c0_40, %c448] : memref<1x16x512xf32, #tpu.memory_space<vmem>>, vector<1x16x32xf32>
    %136 = vector.shape_cast %135 : vector<1x16x32xf32> to vector<16x32xf32>
    %137 = vector.shape_cast %134 : vector<16x32xf32> to vector<1x16x32xf32>
    tpu.vector_store %arg3[%c0_39, %c0_40, %c448], %137 {strides = array<i32>} : memref<1x16x512xf32, #tpu.memory_space<vmem>>, vector<1x16x32xf32>,
    %138 = arith.mulf %7, %7 : vector<16x16xf32>
    %139 = arith.mulf %11, %11 : vector<16x16xf32>
    %140 = arith.addf %138, %139 : vector<16x16xf32>
    %141 = arith.mulf %11, %7 : vector<16x16xf32>
    %142 = arith.mulf %7, %11 : vector<16x16xf32>
    %143 = arith.subf %141, %142 : vector<16x16xf32>
    %144 = tpu.concatenate %140, %143 in 1 : vector<16x16xf32>, vector<16x16xf32> -> vector<16x32xf32>
    %c0_41 = arith.constant 0 : index
    %c0_42 = arith.constant 0 : index
    %c480 = arith.constant 480 : index
    %145 = vector.load %arg3[%c0_41, %c0_42, %c480] : memref<1x16x512xf32, #tpu.memory_space<vmem>>, vector<1x16x32xf32>
    %146 = vector.shape_cast %145 : vector<1x16x32xf32> to vector<16x32xf32>
    %147 = vector.shape_cast %144 : vector<16x32xf32> to vector<1x16x32xf32>
    tpu.vector_store %arg3[%c0_41, %c0_42, %c480], %147 {strides = array<i32>} : memref<1x16x512xf32, #tpu.memory_space<vmem>>, vector<1x16x32xf32>,
    return
  }
  func.func @transform_0(%arg0: i32) -> (i32, i32, i32) {
    %c0_i32 = arith.constant 0 : i32
    %c0_i32_0 = arith.constant 0 : i32
    %c0_i32_1 = arith.constant 0 : i32
    return %arg0, %c0_i32, %c0_i32_0 : i32, i32, i32
  }
  func.func @transform_1(%arg0: i32) -> (i32, i32) {
    %c0_i32 = arith.constant 0 : i32
    %c0_i32_0 = arith.constant 0 : i32
    %c0_i32_1 = arith.constant 0 : i32
    return %c0_i32, %c0_i32_0 : i32, i32
  }
  func.func @transform_2(%arg0: i32) -> (i32, i32, i32) {
    %c0_i32 = arith.constant 0 : i32
    %c0_i32_0 = arith.constant 0 : i32
    %c0_i32_1 = arith.constant 0 : i32
    return %arg0, %c0_i32, %c0_i32_0 : i32, i32, i32
  }
}

</mosaic_0001>

<llo_original>
// kernel: custom-call
$region0: #{custom-call}
  %s0 = inlined_call_operand.vmem [shape: f32[2,4,4,9,16], index: 0, kind: input, shape index: {}]
  %s1 = inlined_call_operand.vmem [shape: f32[2,4,4,9,16], index: 1, kind: input, shape index: {}]
  %s2 = inlined_call_operand.vmem [shape: c64[2,4,4,9,16], index: 2, kind: output, shape index: {}]
  %s4 = scalar_lea.vmem %s2, 288
  %v5 = vld [vmem:[%s0] sm:$0xff]
  %6 = vst [vmem:[%s2] sm:$0xff] %v5
  %s7 = scalar_lea.vmem %s2, 8
  %s8 = scalar_lea.vmem %s0, 8
  %v9 = vld [vmem:[%s8] sm:$0xff]
  %10 = vst [vmem:[%s7] sm:$0xff] %v9
  %s11 = scalar_lea.vmem %s2, 16
  %s12 = scalar_lea.vmem %s0, 16
  %v13 = vld [vmem:[%s12] sm:$0xff]
  %14 = vst [vmem:[%s11] sm:$0xff] %v13
  %s15 = scalar_lea.vmem %s2, 24
  %s16 = scalar_lea.vmem %s0, 24
  %v17 = vld [vmem:[%s16] sm:$0xff]
  %18 = vst [vmem:[%s15] sm:$0xff] %v17
  %s19 = scalar_lea.vmem %s2, 32
  %s20 = scalar_lea.vmem %s0, 32
  %v21 = vld [vmem:[%s20] sm:$0xff]
  %22 = vst [vmem:[%s19] sm:$0xff] %v21
  %s23 = scalar_lea.vmem %s2, 40
  %s24 = scalar_lea.vmem %s0, 40
  %v25 = vld [vmem:[%s24] sm:$0xff]
  %26 = vst [vmem:[%s23] sm:$0xff] %v25
  %s27 = scalar_lea.vmem %s2, 48
  %s28 = scalar_lea.vmem %s0, 48
  %v29 = vld [vmem:[%s28] sm:$0xff]
  %30 = vst [vmem:[%s27] sm:$0xff] %v29
  %s31 = scalar_lea.vmem %s2, 56
  %s32 = scalar_lea.vmem %s0, 56
  %v33 = vld [vmem:[%s32] sm:$0xff]
  %34 = vst [vmem:[%s31] sm:$0xff] %v33
  %s35 = scalar_lea.vmem %s2, 64
  %s36 = scalar_lea.vmem %s0, 64
  %v37 = vld [vmem:[%s36] sm:$0xff]
  %38 = vst [vmem:[%s35] sm:$0xff] %v37
  %s39 = scalar_lea.vmem %s2, 72
  %s40 = scalar_lea.vmem %s0, 72
  %v41 = vld [vmem:[%s40] sm:$0xff]
  %42 = vst [vmem:[%s39] sm:$0xff] %v41
  %s43 = scalar_lea.vmem %s2, 80
  %s44 = scalar_lea.vmem %s0, 80
  %v45 = vld [vmem:[%s44] sm:$0xff]
  %46 = vst [vmem:[%s43] sm:$0xff] %v45
  %s47 = scalar_lea.vmem %s2, 88
  %s48 = scalar_lea.vmem %s0, 88
  %v49 = vld [vmem:[%s48] sm:$0xff]
  %50 = vst [vmem:[%s47] sm:$0xff] %v49
  %s51 = scalar_lea.vmem %s2, 96
  %s52 = scalar_lea.vmem %s0, 96
  %v53 = vld [vmem:[%s52] sm:$0xff]
  %54 = vst [vmem:[%s51] sm:$0xff] %v53
  %s55 = scalar_lea.vmem %s2, 104
  %s56 = scalar_lea.vmem %s0, 104
  %v57 = vld [vmem:[%s56] sm:$0xff]
  %58 = vst [vmem:[%s55] sm:$0xff] %v57
  %s59 = scalar_lea.vmem %s2, 112
  %s60 = scalar_lea.vmem %s0, 112
  %v61 = vld [vmem:[%s60] sm:$0xff]
  %62 = vst [vmem:[%s59] sm:$0xff] %v61
  %s63 = scalar_lea.vmem %s2, 120
  %s64 = scalar_lea.vmem %s0, 120
  %v65 = vld [vmem:[%s64] sm:$0xff]
  %66 = vst [vmem:[%s63] sm:$0xff] %v65
  %s67 = scalar_lea.vmem %s2, 128
  %s68 = scalar_lea.vmem %s0, 128
  %v69 = vld [vmem:[%s68] sm:$0xff]
  %70 = vst [vmem:[%s67] sm:$0xff] %v69
  %s71 = scalar_lea.vmem %s2, 136
  %s72 = scalar_lea.vmem %s0, 136
  %v73 = vld [vmem:[%s72] sm:$0xff]
  %74 = vst [vmem:[%s71] sm:$0xff] %v73
  %s75 = scalar_lea.vmem %s2, 144
  %s76 = scalar_lea.vmem %s0, 144
  %v77 = vld [vmem:[%s76] sm:$0xff]
  %78 = vst [vmem:[%s75] sm:$0xff] %v77
  %s79 = scalar_lea.vmem %s2, 152
  %s80 = scalar_lea.vmem %s0, 152
  %v81 = vld [vmem:[%s80] sm:$0xff]
  %82 = vst [vmem:[%s79] sm:$0xff] %v81
  %s83 = scalar_lea.vmem %s2, 160
  %s84 = scalar_lea.vmem %s0, 160
  %v85 = vld [vmem:[%s84] sm:$0xff]
  %86 = vst [vmem:[%s83] sm:$0xff] %v85
  %s87 = scalar_lea.vmem %s2, 168
  %s88 = scalar_lea.vmem %s0, 168
  %v89 = vld [vmem:[%s88] sm:$0xff]
  %90 = vst [vmem:[%s87] sm:$0xff] %v89
  %s91 = scalar_lea.vmem %s2, 176
  %s92 = scalar_lea.vmem %s0, 176
  %v93 = vld [vmem:[%s92] sm:$0xff]
  %94 = vst [vmem:[%s91] sm:$0xff] %v93
  %s95 = scalar_lea.vmem %s2, 184
  %s96 = scalar_lea.vmem %s0, 184
  %v97 = vld [vmem:[%s96] sm:$0xff]
  %98 = vst [vmem:[%s95] sm:$0xff] %v97
  %s99 = scalar_lea.vmem %s2, 192
  %s100 = scalar_lea.vmem %s0, 192
  %v101 = vld [vmem:[%s100] sm:$0xff]
  %102 = vst [vmem:[%s99] sm:$0xff] %v101
  %s103 = scalar_lea.vmem %s2, 200
  %s104 = scalar_lea.vmem %s0, 200
  %v105 = vld [vmem:[%s104] sm:$0xff]
  %106 = vst [vmem:[%s103] sm:$0xff] %v105
  %s107 = scalar_lea.vmem %s2, 208
  %s108 = scalar_lea.vmem %s0, 208
  %v109 = vld [vmem:[%s108] sm:$0xff]
  %110 = vst [vmem:[%s107] sm:$0xff] %v109
  %s111 = scalar_lea.vmem %s2, 216
  %s112 = scalar_lea.vmem %s0, 216
  %v113 = vld [vmem:[%s112] sm:$0xff]
  %114 = vst [vmem:[%s111] sm:$0xff] %v113
  %s115 = scalar_lea.vmem %s2, 224
  %s116 = scalar_lea.vmem %s0, 224
  %v117 = vld [vmem:[%s116] sm:$0xff]
  %118 = vst [vmem:[%s115] sm:$0xff] %v117
  %s119 = scalar_lea.vmem %s2, 232
  %s120 = scalar_lea.vmem %s0, 232
  %v121 = vld [vmem:[%s120] sm:$0xff]
  %122 = vst [vmem:[%s119] sm:$0xff] %v121
  %s123 = scalar_lea.vmem %s2, 240
  %s124 = scalar_lea.vmem %s0, 240
  %v125 = vld [vmem:[%s124] sm:$0xff]
  %126 = vst [vmem:[%s123] sm:$0xff] %v125
  %s127 = scalar_lea.vmem %s2, 248
  %s128 = scalar_lea.vmem %s0, 248
  %v129 = vld [vmem:[%s128] sm:$0xff]
  %130 = vst [vmem:[%s127] sm:$0xff] %v129
  %s131 = scalar_lea.vmem %s2, 256
  %s132 = scalar_lea.vmem %s0, 256
  %v133 = vld [vmem:[%s132] sm:$0xff]
  %134 = vst [vmem:[%s131] sm:$0xff] %v133
  %s135 = scalar_lea.vmem %s2, 264
  %s136 = scalar_lea.vmem %s0, 264
  %v137 = vld [vmem:[%s136] sm:$0xff]
  %138 = vst [vmem:[%s135] sm:$0xff] %v137
  %s139 = scalar_lea.vmem %s2, 272
  %s140 = scalar_lea.vmem %s0, 272
  %v141 = vld [vmem:[%s140] sm:$0xff]
  %142 = vst [vmem:[%s139] sm:$0xff] %v141
  %s143 = scalar_lea.vmem %s2, 280
  %s144 = scalar_lea.vmem %s0, 280
  %v145 = vld [vmem:[%s144] sm:$0xff]
  %146 = vst [vmem:[%s143] sm:$0xff] %v145
  %v147 = vld [vmem:[%s1] sm:$0xff]
  %148 = vst [vmem:[%s4] sm:$0xff] %v147
  %s149 = scalar_lea.vmem %s4, 8
  %s150 = scalar_lea.vmem %s1, 8
  %v151 = vld [vmem:[%s150] sm:$0xff]
  %152 = vst [vmem:[%s149] sm:$0xff] %v151
  %s153 = scalar_lea.vmem %s4, 16
  %s154 = scalar_lea.vmem %s1, 16
  %v155 = vld [vmem:[%s154] sm:$0xff]
  %156 = vst [vmem:[%s153] sm:$0xff] %v155
  %s157 = scalar_lea.vmem %s4, 24
  %s158 = scalar_lea.vmem %s1, 24
  %v159 = vld [vmem:[%s158] sm:$0xff]
  %160 = vst [vmem:[%s157] sm:$0xff] %v159
  %s161 = scalar_lea.vmem %s4, 32
  %s162 = scalar_lea.vmem %s1, 32
  %v163 = vld [vmem:[%s162] sm:$0xff]
  %164 = vst [vmem:[%s161] sm:$0xff] %v163
  %s165 = scalar_lea.vmem %s4, 40
  %s166 = scalar_lea.vmem %s1, 40
  %v167 = vld [vmem:[%s166] sm:$0xff]
  %168 = vst [vmem:[%s165] sm:$0xff] %v167
  %s169 = scalar_lea.vmem %s4, 48
  %s170 = scalar_lea.vmem %s1, 48
  %v171 = vld [vmem:[%s170] sm:$0xff]
  %172 = vst [vmem:[%s169] sm:$0xff] %v171
  %s173 = scalar_lea.vmem %s4, 56
  %s174 = scalar_lea.vmem %s1, 56
  %v175 = vld [vmem:[%s174] sm:$0xff]
  %176 = vst [vmem:[%s173] sm:$0xff] %v175
  %s177 = scalar_lea.vmem %s4, 64
  %s178 = scalar_lea.vmem %s1, 64
  %v179 = vld [vmem:[%s178] sm:$0xff]
  %180 = vst [vmem:[%s177] sm:$0xff] %v179
  %s181 = scalar_lea.vmem %s4, 72
  %s182 = scalar_lea.vmem %s1, 72
  %v183 = vld [vmem:[%s182] sm:$0xff]
  %184 = vst [vmem:[%s181] sm:$0xff] %v183
  %s185 = scalar_lea.vmem %s4, 80
  %s186 = scalar_lea.vmem %s1, 80
  %v187 = vld [vmem:[%s186] sm:$0xff]
  %188 = vst [vmem:[%s185] sm:$0xff] %v187
  %s189 = scalar_lea.vmem %s4, 88
  %s190 = scalar_lea.vmem %s1, 88
  %v191 = vld [vmem:[%s190] sm:$0xff]
  %192 = vst [vmem:[%s189] sm:$0xff] %v191
  %s193 = scalar_lea.vmem %s4, 96
  %s194 = scalar_lea.vmem %s1, 96
  %v195 = vld [vmem:[%s194] sm:$0xff]
  %196 = vst [vmem:[%s193] sm:$0xff] %v195
  %s197 = scalar_lea.vmem %s4, 104
  %s198 = scalar_lea.vmem %s1, 104
  %v199 = vld [vmem:[%s198] sm:$0xff]
  %200 = vst [vmem:[%s197] sm:$0xff] %v199
  %s201 = scalar_lea.vmem %s4, 112
  %s202 = scalar_lea.vmem %s1, 112
  %v203 = vld [vmem:[%s202] sm:$0xff]
  %204 = vst [vmem:[%s201] sm:$0xff] %v203
  %s205 = scalar_lea.vmem %s4, 120
  %s206 = scalar_lea.vmem %s1, 120
  %v207 = vld [vmem:[%s206] sm:$0xff]
  %208 = vst [vmem:[%s205] sm:$0xff] %v207
  %s209 = scalar_lea.vmem %s4, 128
  %s210 = scalar_lea.vmem %s1, 128
  %v211 = vld [vmem:[%s210] sm:$0xff]
  %212 = vst [vmem:[%s209] sm:$0xff] %v211
  %s213 = scalar_lea.vmem %s4, 136
  %s214 = scalar_lea.vmem %s1, 136
  %v215 = vld [vmem:[%s214] sm:$0xff]
  %216 = vst [vmem:[%s213] sm:$0xff] %v215
  %s217 = scalar_lea.vmem %s4, 144
  %s218 = scalar_lea.vmem %s1, 144
  %v219 = vld [vmem:[%s218] sm:$0xff]
  %220 = vst [vmem:[%s217] sm:$0xff] %v219
  %s221 = scalar_lea.vmem %s4, 152
  %s222 = scalar_lea.vmem %s1, 152
  %v223 = vld [vmem:[%s222] sm:$0xff]
  %224 = vst [vmem:[%s221] sm:$0xff] %v223
  %s225 = scalar_lea.vmem %s4, 160
  %s226 = scalar_lea.vmem %s1, 160
  %v227 = vld [vmem:[%s226] sm:$0xff]
  %228 = vst [vmem:[%s225] sm:$0xff] %v227
  %s229 = scalar_lea.vmem %s4, 168
  %s230 = scalar_lea.vmem %s1, 168
  %v231 = vld [vmem:[%s230] sm:$0xff]
  %232 = vst [vmem:[%s229] sm:$0xff] %v231
  %s233 = scalar_lea.vmem %s4, 176
  %s234 = scalar_lea.vmem %s1, 176
  %v235 = vld [vmem:[%s234] sm:$0xff]
  %236 = vst [vmem:[%s233] sm:$0xff] %v235
  %s237 = scalar_lea.vmem %s4, 184
  %s238 = scalar_lea.vmem %s1, 184
  %v239 = vld [vmem:[%s238] sm:$0xff]
  %240 = vst [vmem:[%s237] sm:$0xff] %v239
  %s241 = scalar_lea.vmem %s4, 192
  %s242 = scalar_lea.vmem %s1, 192
  %v243 = vld [vmem:[%s242] sm:$0xff]
  %244 = vst [vmem:[%s241] sm:$0xff] %v243
  %s245 = scalar_lea.vmem %s4, 200
  %s246 = scalar_lea.vmem %s1, 200
  %v247 = vld [vmem:[%s246] sm:$0xff]
  %248 = vst [vmem:[%s245] sm:$0xff] %v247
  %s249 = scalar_lea.vmem %s4, 208
  %s250 = scalar_lea.vmem %s1, 208
  %v251 = vld [vmem:[%s250] sm:$0xff]
  %252 = vst [vmem:[%s249] sm:$0xff] %v251
  %s253 = scalar_lea.vmem %s4, 216
  %s254 = scalar_lea.vmem %s1, 216
  %v255 = vld [vmem:[%s254] sm:$0xff]
  %256 = vst [vmem:[%s253] sm:$0xff] %v255
  %s257 = scalar_lea.vmem %s4, 224
  %s258 = scalar_lea.vmem %s1, 224
  %v259 = vld [vmem:[%s258] sm:$0xff]
  %260 = vst [vmem:[%s257] sm:$0xff] %v259
  %s261 = scalar_lea.vmem %s4, 232
  %s262 = scalar_lea.vmem %s1, 232
  %v263 = vld [vmem:[%s262] sm:$0xff]
  %264 = vst [vmem:[%s261] sm:$0xff] %v263
  %s265 = scalar_lea.vmem %s4, 240
  %s266 = scalar_lea.vmem %s1, 240
  %v267 = vld [vmem:[%s266] sm:$0xff]
  %268 = vst [vmem:[%s265] sm:$0xff] %v267
  %s269 = scalar_lea.vmem %s4, 248
  %s270 = scalar_lea.vmem %s1, 248
  %v271 = vld [vmem:[%s270] sm:$0xff]
  %272 = vst [vmem:[%s269] sm:$0xff] %v271
  %s273 = scalar_lea.vmem %s4, 256
  %s274 = scalar_lea.vmem %s1, 256
  %v275 = vld [vmem:[%s274] sm:$0xff]
  %276 = vst [vmem:[%s273] sm:$0xff] %v275
  %s277 = scalar_lea.vmem %s4, 264
  %s278 = scalar_lea.vmem %s1, 264
  %v279 = vld [vmem:[%s278] sm:$0xff]
  %280 = vst [vmem:[%s277] sm:$0xff] %v279
  %s281 = scalar_lea.vmem %s4, 272
  %s282 = scalar_lea.vmem %s1, 272
  %v283 = vld [vmem:[%s282] sm:$0xff]
  %284 = vst [vmem:[%s281] sm:$0xff] %v283
  %s285 = scalar_lea.vmem %s4, 280
  %s286 = scalar_lea.vmem %s1, 280
  %v287 = vld [vmem:[%s286] sm:$0xff]
  %288 = vst [vmem:[%s285] sm:$0xff] %v287

// kernel: cross_spectra_forward.1
$region0: #{cross_spectra_forward.1}
  #allocation0 [shape = 'u32[]', space=smem, size = 0x4, offset = 0x4, fixed_abs, tag = 'smem constant byte address 0x4 - core index']
  #allocation1 [shape = 'u32[144,128]{1,0:T(1,128)}', space=vmem, size = 0x12000, scoped, tag = 'internal scratch']
  %s0 = inlined_call_operand.vmem [shape: f32[2,64,32], index: 0, kind: input, shape index: {}]
  %s1 = inlined_call_operand.vmem [shape: f32[32,32], index: 1, kind: input, shape index: {}]
  %s2 = inlined_call_operand.vmem [shape: f32[2,16,512], index: 2, kind: output, shape index: {}]
  %s3 = sld [smem:[#allocation0]]
  $region41: #{cross_spectra_forward.1} parent=0
    _
  %s5 = ssub.s32 1, %s3
  %s6 = scalar_select 0, %s5, %s3
  loop: start=0, step=1, limit=4
  $region2: #{cross_spectra_forward.1} parent=0 // loop_pre_header
    _
  $region3: #{cross_spectra_forward.1} parent=0 // loop_header
    %s8 = sphi 0, %s12
    %p9 = scmp.ge.s32.totalorder %s8, 4
    %s18 = sphi 0, %s20
    %s21 = sphi 0, %s18
    %s22 = sphi 0, %s21
    %s38 = sphi 0, %s22
    %s42 = sphi 0, %s42
    %s44 = sphi 0, %s42
    %s45 = sphi 0, %s44
    %s59 = sphi 0, %s45
    %s65 = sphi 0, %s67
    %s68 = sphi 0, %s65
    %s69 = sphi 0, %s68
    %s85 = sphi 0, %s69
  $region4: #{cross_spectra_forward.1} parent=0 // loop_header_branch
    %11 = sbr.rel (%p9) target = $region8
  $region5: #{cross_spectra_forward.1} parent=0 // loop_body
    %s13 = ssub.s32 %s8, 1
    %s14 = ssub.s32 %s8, 2
    %s15 = sadd.s32 %s8, 1
    %s16 = ssub.s32 %s8, %s15
    %p17 = scmp.eq.s32.totalorder %s16, 0
    %s19 = sadd.s32 %s18, 1
    %s20 = scalar_select %p17, %s18, %s19
    %p23 = pneg %p17
    %p24 = scmp.eq.s32.totalorder %s8, 1
    %p25 = por %p23, %p24
    %p26 = scmp.ne.s32.totalorder %s18, %s21
    %p27 = scmp.eq.s32.totalorder %s8, 0
    %p28 = por %p26, %p27
    %p29 = scmp.ne.s32.totalorder %s18, %s21
    %p30 = scmp.eq.s32.totalorder %s13, 1
    %p31 = por %p29, %p30
    %p32 = scmp.ne.s32.totalorder %s21, %s22
    %p33 = scmp.eq.s32.totalorder %s13, 0
    %p34 = por %p32, %p33
    %p35 = scmp.ne.s32.totalorder %s21, %s22
    %p36 = scmp.eq.s32.totalorder %s14, 1
    %p37 = por %p35, %p36
    %p39 = scmp.ne.s32.totalorder %s22, %s38
    %p40 = scmp.eq.s32.totalorder %s14, 0
    %p41 = por %p39, %p40
    %s43 = sadd.s32 %s42, 1
    %p46 = scmp.eq.s32.totalorder %s8, 1
    %p47 = scmp.ne.s32.totalorder %s42, %s44
    %p48 = scmp.eq.s32.totalorder %s8, 0
    %p49 = por %p47, %p48
    %p50 = scmp.ne.s32.totalorder %s42, %s44
    %p51 = scmp.eq.s32.totalorder %s13, 1
    %p52 = por %p50, %p51
    %p53 = scmp.ne.s32.totalorder %s44, %s45
    %p54 = scmp.eq.s32.totalorder %s13, 0
    %p55 = por %p53, %p54
    %p56 = scmp.ne.s32.totalorder %s44, %s45
    %p57 = scmp.eq.s32.totalorder %s14, 1
    %p58 = por %p56, %p57
    %p60 = scmp.ne.s32.totalorder %s45, %s59
    %p61 = scmp.eq.s32.totalorder %s14, 0
    %p62 = por %p60, %p61
    %s63 = ssub.s32 %s8, %s15
    %p64 = scmp.eq.s32.totalorder %s63, 0
    %s66 = sadd.s32 %s65, 1
    %s67 = scalar_select %p64, %s65, %s66
    %p70 = pneg %p64
    %p71 = scmp.eq.s32.totalorder %s8, 1
    %p72 = por %p70, %p71
    %p73 = scmp.ne.s32.totalorder %s65, %s68
    %p74 = scmp.eq.s32.totalorder %s8, 0
    %p75 = por %p73, %p74
    %p76 = scmp.ne.s32.totalorder %s65, %s68
    %p77 = scmp.eq.s32.totalorder %s13, 1
    %p78 = por %p76, %p77
    %p79 = scmp.ne.s32.totalorder %s68, %s69
    %p80 = scmp.eq.s32.totalorder %s13, 0
    %p81 = por %p79, %p80
    %p82 = scmp.ne.s32.totalorder %s68, %s69
    %p83 = scmp.eq.s32.totalorder %s14, 1
    %p84 = por %p82, %p83
    %p86 = scmp.ne.s32.totalorder %s69, %s85
    %p87 = scmp.eq.s32.totalorder %s14, 0
    %p88 = por %p86, %p87
    %p89 = scmp.le.s32.totalorder 1, %s8
    %p90 = scmp.lt.s32.totalorder %s8, 3
    %p91 = pnand %p89, %p90
    %p92 = pneg %p91
    // Predicated region
    $region9: #{cross_spectra_forward.1} parent=5 // pred_check
      _
    $region10: #{cross_spectra_forward.1} parent=5 // pred_check_branch
      %94 = sbr.rel (%p91) target = $region12
    $region11: #{cross_spectra_forward.1} parent=5 // pred_region
      %s95 = ssub.s32 %s8, 1
      // Predicated region
      $region13: #{cross_spectra_forward.1} parent=11 // pred_check
        %p96 = pneg %p55
      $region14: #{cross_spectra_forward.1} parent=11 // pred_check_branch
        %98 = sbr.rel (%p96) target = $region16
      $region15: #{cross_spectra_forward.1} parent=11 // pred_region
        _
      $region16: #{cross_spectra_forward.1} parent=11 // pred_fallthru
        _
    $region12: #{cross_spectra_forward.1} parent=5 // pred_fallthru
      _
    %p99 = scmp.lt.s32.totalorder %s8, 2
    // Predicated region
    $region17: #{cross_spectra_forward.1} parent=5 // pred_check
      %p100 = pneg %p99
    $region18: #{cross_spectra_forward.1} parent=5 // pred_check_branch
      %102 = sbr.rel (%p100) target = $region20
    $region19: #{cross_spectra_forward.1} parent=5 // pred_region
      // Predicated region
      $region21: #{cross_spectra_forward.1} parent=19 // pred_check
        %p103 = pneg %p28
      $region22: #{cross_spectra_forward.1} parent=19 // pred_check_branch
        %105 = sbr.rel (%p103) target = $region24
      $region23: #{cross_spectra_forward.1} parent=19 // pred_region
        %p106 = scmp.lt.s32.totalorder %s8, 1
        %s107 = scalar_select %p106, %s8, 1
        %s108 = smul.addr %s107, 8
        %s109 = smul.addr %s108, 8
        %s110 = scalar_lea.vmem %s0, %s109
      $region24: #{cross_spectra_forward.1} parent=19 // pred_fallthru
        _
    $region20: #{cross_spectra_forward.1} parent=5 // pred_fallthru
      _
    %p111 = scmp.le.s32.totalorder 1, %s8
    %p112 = scmp.lt.s32.totalorder %s8, 3
    %p113 = pnand %p111, %p112
    %p114 = pneg %p113
    // Predicated region
    $region25: #{cross_spectra_forward.1} parent=5 // pred_check
      _
    $region26: #{cross_spectra_forward.1} parent=5 // pred_check_branch
      %116 = sbr.rel (%p113) target = $region28
    $region27: #{cross_spectra_forward.1} parent=5 // pred_region
      %s117 = ssub.s32 %s8, 1
      %p118 = scmp.lt.s32.totalorder %s13, 1
      %s119 = scalar_select %p118, %s13, 1
      %s120 = smul.addr %s119, 8
      %s121 = smul.addr %s120, 8
      %s122 = scalar_lea.vmem %s0, %s121
      %p123 = pneg %p34
      %p124 = pneg %p31
      %p125 = pneg %p55
      %p126 = pneg %p52
      %p127 = pneg %p81
      %p128 = pneg %p78
      %p129 = scmp.lt.s32.totalorder %s13, 1
      %s130 = scalar_select %p129, %s13, 1
      %s131 = smul.addr %s130, 8
      %s132 = smul.addr %s131, 8
      %s133 = scalar_lea.vmem %s2, %s132
      %p134 = scmp.lt.s32.totalorder %s13, 1
      %s135 = scalar_select %p134, %s13, 1
      %s136 = smul.addr %s135, 8
      %s137 = smul.addr %s136, 8
      %s138 = scalar_lea.vmem %s0, %s137
      %p139 = scmp.lt.s32.totalorder %s13, 1
      %s140 = scalar_select %p139, %s13, 1
      %s141 = smul.addr %s140, 8
      %s142 = smul.addr %s141, 8
      %s143 = scalar_lea.vmem %s2, %s142
      %v144 = vld [vmem:[%s138] sm:$0xff]
      %v145 = vld [vmem:[%s138 + $0x8] sm:$0xff]
      %v146 = vld [vmem:[%s138 + $0x10] sm:$0xff]
      %v147 = vld [vmem:[%s138 + $0x18] sm:$0xff]
      %v148 = vld [vmem:[%s138 + $0x20] sm:$0xff]
      %v149 = vld [vmem:[%s138 + $0x28] sm:$0xff]
      %v150 = vld [vmem:[%s138 + $0x30] sm:$0xff]
      %v151 = vld [vmem:[%s138 + $0x38] sm:$0xff]
      %v152 = vld [vmem:[%s1] sm:$0xff]
      %v153 = vld [vmem:[%s1 + $0x8] sm:$0xff]
      %v154 = vld [vmem:[%s1 + $0x10] sm:$0xff]
      %v155 = vld [vmem:[%s1 + $0x18] sm:$0xff]
      %vm156 = vcmask 261120
      %v158 = vsel %vm156, %v144, 0
      %v161 = vsel %vm156, %v145, 0
      %v164 = vsel %vm156, %v146, 0
      %v167 = vsel %vm156, %v147, 0
      %v170 = vsel %vm156, %v148, 0
      %v173 = vsel %vm156, %v149, 0
      %v176 = vsel %vm156, %v150, 0
      %v179 = vsel %vm156, %v151, 0
      %181 = vmatprep.subr.mxu0 0.0
      %182 = vmatpush1.msra.mxu0 %v152
      %183 = vmatprep.subr.mxu0 0.0
      %184 = vmatpush1.msra.mxu0 %v153
      %185 = vmatprep.subr.mxu0 0.0
      %186 = vmatpush1.msra.mxu0 %v154
      %187 = vmatprep.subr.mxu0 0.0
      %188 = vmatpush1.msra.mxu0 %v155
      %189 = vmatprep.subr.mxu0 0.0
      %190 = vmatpush1.msra.mxu0 0.0
      %191 = vmatprep.subr.mxu0 0.0
      %192 = vmatpush1.msra.mxu0 0.0
      %193 = vmatprep.subr.mxu0 0.0
      %194 = vmatpush1.msra.mxu0 0.0
      %195 = vmatprep.subr.mxu0 0.0
      %196 = vmatpush1.msra.mxu0 0.0
      %197 = vmatprep.subr.mxu0 0.0
      %198 = vmatpush1.msra.mxu0 0.0
      %199 = vmatprep.subr.mxu0 0.0
      %200 = vmatpush1.msra.mxu0 0.0
      %201 = vmatprep.subr.mxu0 0.0
      %202 = vmatpush1.msra.mxu0 0.0
      %203 = vmatprep.subr.mxu0 0.0
      %204 = vmatpush1.msra.mxu0 0.0
      %205 = vmatprep.subr.mxu0 0.0
      %206 = vmatpush1.msra.mxu0 0.0
      %207 = vmatprep.subr.mxu0 0.0
      %208 = vmatpush1.msra.mxu0 0.0
      %209 = vmatprep.subr.mxu0 0.0
      %210 = vmatpush1.msra.mxu0 0.0
      %211 = vmatprep.subr.mxu0 0.0
      %212 = vmatpush1.msra.mxu0 0.0
      %213 = vmatprep.subr.mxu0 0.0
      %214 = vmatpush1.msra.mxu0 0.0
      %215 = vmatprep.subr.mxu0 0.0
      %216 = vmatpush1.msra.mxu0 0.0
      %217 = vmatprep.subr.mxu0 0.0
      %218 = vmatpush1.msra.mxu0 0.0
      %219 = vmatprep.subr.mxu0 0.0
      %220 = vmatpush1.msra.mxu0 0.0
      %221 = vmatprep.subr.mxu0 0.0
      %222 = vmatpush1.msra.mxu0 0.0
      %223 = vmatprep.subr.mxu0 0.0
      %224 = vmatpush1.msra.mxu0 0.0
      %225 = vmatprep.subr.mxu0 0.0
      %226 = vmatpush1.msra.mxu0 0.0
      %227 = vmatprep.subr.mxu0 0.0
      %228 = vmatpush1.msra.mxu0 0.0
      %229 = vmatprep.subr.mxu0 0.0
      %230 = vmatpush1.msra.mxu0 0.0
      %231 = vmatprep.subr.mxu0 0.0
      %232 = vmatpush1.msra.mxu0 0.0
      %233 = vmatprep.subr.mxu0 0.0
      %234 = vmatpush1.msra.mxu0 0.0
      %235 = vmatprep.subr.mxu0 0.0
      %236 = vmatpush1.msra.mxu0 0.0
      %237 = vmatprep.subr.mxu0 0.0
      %238 = vmatpush1.msra.mxu0 0.0
      %239 = vmatprep.subr.mxu0 0.0
      %240 = vmatpush1.msra.mxu0 0.0
      %241 = vmatprep.subr.mxu0 0.0
      %242 = vmatpush1.msra.mxu0 0.0
      %243 = vmatprep.subr.mxu0 0.0
      %244 = vmatpush1.msra.mxu0 0.0
      %245 = vmatprep.mubr.f32.mxu0 0.0
      %246 = vmatmul.mubr.f32.gmra.mrb[0].mxu0 %v158
      %v247 = vpop.f32.mrb[0].mxu0
      %v248 = vadd.f32 0.0, %v247
      %v249 = vpop.f32.mrb[0].mxu0
      %250 = vmatprep.mubr.f32.mxu0 0.0
      %251 = vmatmul.mubr.f32.gmra.mrb[0].mxu0 %v161
      %v252 = vpop.f32.mrb[0].mxu0
      %v253 = vadd.f32 0.0, %v252
      %v254 = vpop.f32.mrb[0].mxu0
      %255 = vmatprep.mubr.f32.mxu0 0.0
      %256 = vmatmul.mubr.f32.gmra.mrb[0].mxu0 %v164
      %v257 = vpop.f32.mrb[0].mxu0
      %v258 = vadd.f32 0.0, %v257
      %v259 = vpop.f32.mrb[0].mxu0
      %260 = vmatprep.mubr.f32.mxu0 0.0
      %261 = vmatmul.mubr.f32.gmra.mrb[0].mxu0 %v167
      %v262 = vpop.f32.mrb[0].mxu0
      %v263 = vadd.f32 0.0, %v262
      %v264 = vpop.f32.mrb[0].mxu0
      %265 = vmatprep.mubr.f32.mxu0 0.0
      %266 = vmatmul.mubr.f32.gmra.mrb[0].mxu0 %v170
      %v267 = vpop.f32.mrb[0].mxu0
      %v268 = vadd.f32 0.0, %v267
      %v269 = vpop.f32.mrb[0].mxu0
      %270 = vmatprep.mubr.f32.mxu0 0.0
      %271 = vmatmul.mubr.f32.gmra.mrb[0].mxu0 %v173
      %v272 = vpop.f32.mrb[0].mxu0
      %v273 = vadd.f32 0.0, %v272
      %v274 = vpop.f32.mrb[0].mxu0
      %275 = vmatprep.mubr.f32.mxu0 0.0
      %276 = vmatmul.mubr.f32.gmra.mrb[0].mxu0 %v176
      %v277 = vpop.f32.mrb[0].mxu0
      %v278 = vadd.f32 0.0, %v277
      %v279 = vpop.f32.mrb[0].mxu0
      %280 = vmatprep.mubr.f32.mxu0 0.0
      %281 = vmatmul.mubr.f32.gmra.mrb[0].mxu0 %v179
      %v282 = vpop.f32.mrb[0].mxu0
      %v283 = vadd.f32 0.0, %v282
      %v284 = vpop.f32.mrb[0].mxu0
      %285 = vdwg.mxu0
      %v286 = vmul.f32 %v248, %v248
      %v287 = vmul.f32 %v253, %v253
      %290 = vrot.lane.b32.xlu0 %v286, 112
      %v291 = vpop.permute.xlu0 %290
      %292 = vrot.lane.b32.xlu0 %v287, 112
      %v293 = vpop.permute.xlu0 %292
      %v296 = vadd.f32 %v286, %v291
      %v297 = vadd.f32 %v287, %v293
      %300 = vrot.lane.b32.xlu0 %v248, 16
      %v301 = vpop.permute.xlu0 %300
      %302 = vrot.lane.b32.xlu0 %v253, 16
      %v303 = vpop.permute.xlu0 %302
      %v306 = vmul.f32 %v248, %v301
      %v307 = vmul.f32 %v253, %v303
      %v308 = vsub.f32 %v306, %v306
      %v309 = vsub.f32 %v307, %v307
      %vm310 = vcmask 130048
      %v311 = vsel %vm310, %v296, %v308
      %v312 = vsel %vm310, %v297, %v309
      %313 = vst.msk [vmem:[%s143] sm:$0xff] %vm156, %v311
      %314 = vst.msk [vmem:[%s143 + $0x20] sm:$0xff] %vm156, %v312
      %v315 = vmul.f32 %v248, %v258
      %v316 = vmul.f32 %v253, %v263
      %319 = vrot.lane.b32.xlu0 %v315, 112
      %v320 = vpop.permute.xlu0 %319
      %321 = vrot.lane.b32.xlu0 %v316, 112
      %v322 = vpop.permute.xlu0 %321
      %v325 = vadd.f32 %v315, %v320
      %v326 = vadd.f32 %v316, %v322
      %329 = vrot.lane.b32.xlu0 %v258, 16
      %v330 = vpop.permute.xlu0 %329
      %331 = vrot.lane.b32.xlu0 %v263, 16
      %v332 = vpop.permute.xlu0 %331
      %v335 = vmul.f32 %v248, %v330
      %v336 = vmul.f32 %v253, %v332
      %337 = vrot.lane.b32.xlu0 %v258, 112
      %v338 = vpop.permute.xlu0 %337
      %339 = vrot.lane.b32.xlu0 %v263, 112
      %v340 = vpop.permute.xlu0 %339
      %v343 = vmul.f32 %v248, %v338
      %v344 = vmul.f32 %v253, %v340
      %347 = vrot.lane.b32.xlu0 %v343, 16
      %v348 = vpop.permute.xlu0 %347
      %349 = vrot.lane.b32.xlu0 %v344, 16
      %v350 = vpop.permute.xlu0 %349
      %v353 = vsub.f32 %v335, %v348
      %v354 = vsub.f32 %v336, %v350
      %v355 = vsel %vm310, %v325, %v353
      %v356 = vsel %vm310, %v326, %v354
      %359 = vrot.lane.b32.xlu0 %v355, 32
      %v360 = vpop.permute.xlu0 %359
      %361 = vrot.lane.b32.xlu0 %v356, 32
      %v362 = vpop.permute.xlu0 %361
      %vm365 = vcmask 523520
      %366 = vst.msk [vmem:[%s143] sm:$0xff] %vm365, %v360
      %367 = vst.msk [vmem:[%s143 + $0x20] sm:$0xff] %vm365, %v362
      %v368 = vsub.f32 0.0, %v353
      %v369 = vsub.f32 0.0, %v354
      %v370 = vsel %vm310, %v325, %v368
      %v371 = vsel %vm310, %v326, %v369
      %372 = vst.msk [vmem:[%s143 + $0x8] sm:$0xff] %vm156, %v370
      %373 = vst.msk [vmem:[%s143 + $0x28] sm:$0xff] %vm156, %v371
      %v374 = vmul.f32 %v248, %v268
      %v375 = vmul.f32 %v253, %v273
      %378 = vrot.lane.b32.xlu0 %v374, 112
      %v379 = vpop.permute.xlu0 %378
      %380 = vrot.lane.b32.xlu0 %v375, 112
      %v381 = vpop.permute.xlu0 %380
      %v384 = vadd.f32 %v374, %v379
      %v385 = vadd.f32 %v375, %v381
      %388 = vrot.lane.b32.xlu0 %v268, 16
      %v389 = vpop.permute.xlu0 %388
      %390 = vrot.lane.b32.xlu0 %v273, 16
      %v391 = vpop.permute.xlu0 %390
      %v394 = vmul.f32 %v248, %v389
      %v395 = vmul.f32 %v253, %v391
      %396 = vrot.lane.b32.xlu0 %v268, 112
      %v397 = vpop.permute.xlu0 %396
      %398 = vrot.lane.b32.xlu0 %v273, 112
      %v399 = vpop.permute.xlu0 %398
      %v402 = vmul.f32 %v248, %v397
      %v403 = vmul.f32 %v253, %v399
      %406 = vrot.lane.b32.xlu0 %v402, 16
      %v407 = vpop.permute.xlu0 %406
      %408 = vrot.lane.b32.xlu0 %v403, 16
      %v409 = vpop.permute.xlu0 %408
      %v412 = vsub.f32 %v394, %v407
      %v413 = vsub.f32 %v395, %v409
      %v414 = vsel %vm310, %v384, %v412
      %v415 = vsel %vm310, %v385, %v413
      %418 = vrot.lane.b32.xlu0 %v414, 64
      %v419 = vpop.permute.xlu0 %418
      %420 = vrot.lane.b32.xlu0 %v415, 64
      %v421 = vpop.permute.xlu0 %420
      %vm424 = vcmask 785920
      %425 = vst.msk [vmem:[%s143] sm:$0xff] %vm424, %v419
      %426 = vst.msk [vmem:[%s143 + $0x20] sm:$0xff] %vm424, %v421
      %v427 = vsub.f32 0.0, %v412
      %v428 = vsub.f32 0.0, %v413
      %v429 = vsel %vm310, %v384, %v427
      %v430 = vsel %vm310, %v385, %v428
      %431 = vst.msk [vmem:[%s143 + $0x10] sm:$0xff] %vm156, %v429
      %432 = vst.msk [vmem:[%s143 + $0x30] sm:$0xff] %vm156, %v430
      %v433 = vmul.f32 %v248, %v278
      %v434 = vmul.f32 %v253, %v283
      %437 = vrot.lane.b32.xlu0 %v433, 112
      %v438 = vpop.permute.xlu0 %437
      %439 = vrot.lane.b32.xlu0 %v434, 112
      %v440 = vpop.permute.xlu0 %439
      %v443 = vadd.f32 %v433, %v438
      %v444 = vadd.f32 %v434, %v440
      %447 = vrot.lane.b32.xlu0 %v278, 16
      %v448 = vpop.permute.xlu0 %447
      %449 = vrot.lane.b32.xlu0 %v283, 16
      %v450 = vpop.permute.xlu0 %449
      %v453 = vmul.f32 %v248, %v448
      %v454 = vmul.f32 %v253, %v450
      %455 = vrot.lane.b32.xlu0 %v278, 112
      %v456 = vpop.permute.xlu0 %455
      %457 = vrot.lane.b32.xlu0 %v283, 112
      %v458 = vpop.permute.xlu0 %457
      %v461 = vmul.f32 %v248, %v456
      %v462 = vmul.f32 %v253, %v458
      %465 = vrot.lane.b32.xlu0 %v461, 16
      %v466 = vpop.permute.xlu0 %465
      %467 = vrot.lane.b32.xlu0 %v462, 16
      %v468 = vpop.permute.xlu0 %467
      %v471 = vsub.f32 %v453, %v466
      %v472 = vsub.f32 %v454, %v468
      %v473 = vsel %vm310, %v443, %v471
      %v474 = vsel %vm310, %v444, %v472
      %477 = vrot.lane.b32.xlu0 %v473, 96
      %v478 = vpop.permute.xlu0 %477
      %479 = vrot.lane.b32.xlu0 %v474, 96
      %v480 = vpop.permute.xlu0 %479
      %vm483 = vcmask 1048320
      %484 = vst.msk [vmem:[%s143] sm:$0xff] %vm483, %v478
      %485 = vst.msk [vmem:[%s143 + $0x20] sm:$0xff] %vm483, %v480
      %v486 = vsub.f32 0.0, %v471
      %v487 = vsub.f32 0.0, %v472
      %v488 = vsel %vm310, %v443, %v486
      %v489 = vsel %vm310, %v444, %v487
      %490 = vst.msk [vmem:[%s143 + $0x18] sm:$0xff] %vm156, %v488
      %491 = vst.msk [vmem:[%s143 + $0x38] sm:$0xff] %vm156, %v489
      %v492 = vmul.f32 %v258, %v258
      %v493 = vmul.f32 %v263, %v263
      %496 = vrot.lane.b32.xlu0 %v492, 112
      %v497 = vpop.permute.xlu0 %496
      %498 = vrot.lane.b32.xlu0 %v493, 112
      %v499 = vpop.permute.xlu0 %498
      %v502 = vadd.f32 %v492, %v497
      %v503 = vadd.f32 %v493, %v499
      %v504 = vmul.f32 %v258, %v330
      %v505 = vmul.f32 %v263, %v332
      %v506 = vsub.f32 %v504, %v504
      %v507 = vsub.f32 %v505, %v505
      %v508 = vsel %vm310, %v502, %v506
      %v509 = vsel %vm310, %v503, %v507
      %512 = vrot.lane.b32.xlu0 %v508, 32
      %v513 = vpop.permute.xlu0 %512
      %514 = vrot.lane.b32.xlu0 %v509, 32
      %v515 = vpop.permute.xlu0 %514
      %518 = vst.msk [vmem:[%s143 + $0x8] sm:$0xff] %vm365, %v513
      %519 = vst.msk [vmem:[%s143 + $0x28] sm:$0xff] %vm365, %v515
      %v520 = vmul.f32 %v258, %v268
      %v521 = vmul.f32 %v263, %v273
      %524 = vrot.lane.b32.xlu0 %v520, 112
      %v525 = vpop.permute.xlu0 %524
      %526 = vrot.lane.b32.xlu0 %v521, 112
      %v527 = vpop.permute.xlu0 %526
      %v530 = vadd.f32 %v520, %v525
      %v531 = vadd.f32 %v521, %v527
      %v532 = vmul.f32 %v258, %v389
      %v533 = vmul.f32 %v263, %v391
      %v534 = vmul.f32 %v258, %v397
      %v535 = vmul.f32 %v263, %v399
      %538 = vrot.lane.b32.xlu0 %v534, 16
      %v539 = vpop.permute.xlu0 %538
      %540 = vrot.lane.b32.xlu0 %v535, 16
      %v541 = vpop.permute.xlu0 %540
      %v544 = vsub.f32 %v532, %v539
      %v545 = vsub.f32 %v533, %v541
      %v546 = vsel %vm310, %v530, %v544
      %v547 = vsel %vm310, %v531, %v545
      %550 = vrot.lane.b32.xlu0 %v546, 64
      %v551 = vpop.permute.xlu0 %550
      %552 = vrot.lane.b32.xlu0 %v547, 64
      %v553 = vpop.permute.xlu0 %552
      %556 = vst.msk [vmem:[%s143 + $0x8] sm:$0xff] %vm424, %v551
      %557 = vst.msk [vmem:[%s143 + $0x28] sm:$0xff] %vm424, %v553
      %v558 = vsub.f32 0.0, %v544
      %v559 = vsub.f32 0.0, %v545
      %v560 = vsel %vm310, %v530, %v558
      %v561 = vsel %vm310, %v531, %v559
      %564 = vrot.lane.b32.xlu0 %v560, 32
      %v565 = vpop.permute.xlu0 %564
      %566 = vrot.lane.b32.xlu0 %v561, 32
      %v567 = vpop.permute.xlu0 %566
      %570 = vst.msk [vmem:[%s143 + $0x10] sm:$0xff] %vm365, %v565
      %571 = vst.msk [vmem:[%s143 + $0x30] sm:$0xff] %vm365, %v567
      %v572 = vmul.f32 %v258, %v278
      %v573 = vmul.f32 %v263, %v283
      %576 = vrot.lane.b32.xlu0 %v572, 112
      %v577 = vpop.permute.xlu0 %576
      %578 = vrot.lane.b32.xlu0 %v573, 112
      %v579 = vpop.permute.xlu0 %578
      %v582 = vadd.f32 %v572, %v577
      %v583 = vadd.f32 %v573, %v579
      %v584 = vmul.f32 %v258, %v448
      %v585 = vmul.f32 %v263, %v450
      %v586 = vmul.f32 %v258, %v456
      %v587 = vmul.f32 %v263, %v458
      %590 = vrot.lane.b32.xlu0 %v586, 16
      %v591 = vpop.permute.xlu0 %590
      %592 = vrot.lane.b32.xlu0 %v587, 16
      %v593 = vpop.permute.xlu0 %592
      %v596 = vsub.f32 %v584, %v591
      %v597 = vsub.f32 %v585, %v593
      %v598 = vsel %vm310, %v582, %v596
      %v599 = vsel %vm310, %v583, %v597
      %602 = vrot.lane.b32.xlu0 %v598, 96
      %v603 = vpop.permute.xlu0 %602
      %604 = vrot.lane.b32.xlu0 %v599, 96
      %v605 = vpop.permute.xlu0 %604
      %608 = vst.msk [vmem:[%s143 + $0x8] sm:$0xff] %vm483, %v603
      %609 = vst.msk [vmem:[%s143 + $0x28] sm:$0xff] %vm483, %v605
      %v610 = vsub.f32 0.0, %v596
      %v611 = vsub.f32 0.0, %v597
      %v612 = vsel %vm310, %v582, %v610
      %v613 = vsel %vm310, %v583, %v611
      %616 = vrot.lane.b32.xlu0 %v612, 32
      %v617 = vpop.permute.xlu0 %616
      %618 = vrot.lane.b32.xlu0 %v613, 32
      %v619 = vpop.permute.xlu0 %618
      %622 = vst.msk [vmem:[%s143 + $0x18] sm:$0xff] %vm365, %v617
      %623 = vst.msk [vmem:[%s143 + $0x38] sm:$0xff] %vm365, %v619
      %v624 = vmul.f32 %v268, %v268
      %v625 = vmul.f32 %v273, %v273
      %628 = vrot.lane.b32.xlu0 %v624, 112
      %v629 = vpop.permute.xlu0 %628
      %630 = vrot.lane.b32.xlu0 %v625, 112
      %v631 = vpop.permute.xlu0 %630
      %v634 = vadd.f32 %v624, %v629
      %v635 = vadd.f32 %v625, %v631
      %v636 = vmul.f32 %v268, %v389
      %v637 = vmul.f32 %v273, %v391
      %v638 = vsub.f32 %v636, %v636
      %v639 = vsub.f32 %v637, %v637
      %v640 = vsel %vm310, %v634, %v638
      %v641 = vsel %vm310, %v635, %v639
      %644 = vrot.lane.b32.xlu0 %v640, 64
      %v645 = vpop.permute.xlu0 %644
      %646 = vrot.lane.b32.xlu0 %v641, 64
      %v647 = vpop.permute.xlu0 %646
      %650 = vst.msk [vmem:[%s143 + $0x10] sm:$0xff] %vm424, %v645
      %651 = vst.msk [vmem:[%s143 + $0x30] sm:$0xff] %vm424, %v647
      %v652 = vmul.f32 %v268, %v278
      %v653 = vmul.f32 %v273, %v283
      %656 = vrot.lane.b32.xlu0 %v652, 112
      %v657 = vpop.permute.xlu0 %656
      %658 = vrot.lane.b32.xlu0 %v653, 112
      %v659 = vpop.permute.xlu0 %658
      %v662 = vadd.f32 %v652, %v657
      %v663 = vadd.f32 %v653, %v659
      %v664 = vmul.f32 %v268, %v448
      %v665 = vmul.f32 %v273, %v450
      %v666 = vmul.f32 %v268, %v456
      %v667 = vmul.f32 %v273, %v458
      %670 = vrot.lane.b32.xlu0 %v666, 16
      %v671 = vpop.permute.xlu0 %670
      %672 = vrot.lane.b32.xlu0 %v667, 16
      %v673 = vpop.permute.xlu0 %672
      %v676 = vsub.f32 %v664, %v671
      %v677 = vsub.f32 %v665, %v673
      %v678 = vsel %vm310, %v662, %v676
      %v679 = vsel %vm310, %v663, %v677
      %682 = vrot.lane.b32.xlu0 %v678, 96
      %v683 = vpop.permute.xlu0 %682
      %684 = vrot.lane.b32.xlu0 %v679, 96
      %v685 = vpop.permute.xlu0 %684
      %688 = vst.msk [vmem:[%s143 + $0x10] sm:$0xff] %vm483, %v683
      %689 = vst.msk [vmem:[%s143 + $0x30] sm:$0xff] %vm483, %v685
      %v690 = vsub.f32 0.0, %v676
      %v691 = vsub.f32 0.0, %v677
      %v692 = vsel %vm310, %v662, %v690
      %v693 = vsel %vm310, %v663, %v691
      %696 = vrot.lane.b32.xlu0 %v692, 64
      %v697 = vpop.permute.xlu0 %696
      %698 = vrot.lane.b32.xlu0 %v693, 64
      %v699 = vpop.permute.xlu0 %698
      %702 = vst.msk [vmem:[%s143 + $0x18] sm:$0xff] %vm424, %v697
      %703 = vst.msk [vmem:[%s143 + $0x38] sm:$0xff] %vm424, %v699
      %v704 = vmul.f32 %v278, %v278
      %v705 = vmul.f32 %v283, %v283
      %708 = vrot.lane.b32.xlu0 %v704, 112
      %v709 = vpop.permute.xlu0 %708
      %710 = vrot.lane.b32.xlu0 %v705, 112
      %v711 = vpop.permute.xlu0 %710
      %v714 = vadd.f32 %v704, %v709
      %v715 = vadd.f32 %v705, %v711
      %v716 = vmul.f32 %v278, %v448
      %v717 = vmul.f32 %v283, %v450
      %v718 = vsub.f32 %v716, %v716
      %v719 = vsub.f32 %v717, %v717
      %v720 = vsel %vm310, %v714, %v718
      %v721 = vsel %vm310, %v715, %v719
      %724 = vrot.lane.b32.xlu0 %v720, 96
      %v725 = vpop.permute.xlu0 %724
      %726 = vrot.lane.b32.xlu0 %v721, 96
      %v727 = vpop.permute.xlu0 %726
      %730 = vst.msk [vmem:[%s143 + $0x18] sm:$0xff] %vm483, %v725
      %731 = vst.msk [vmem:[%s143 + $0x38] sm:$0xff] %vm483, %v727
      %p732 = scmp.lt.s32.totalorder %s13, 1
      %s733 = scalar_select %p732, %s13, 1
      %s734 = smul.addr %s733, 8
      %s735 = smul.addr %s734, 8
      %s736 = scalar_lea.vmem %s2, %s735
      // Predicated region
      $region29: #{cross_spectra_forward.1} parent=27 // pred_check
        %p737 = pneg %p78
      $region30: #{cross_spectra_forward.1} parent=27 // pred_check_branch
        %739 = sbr.rel (%p737) target = $region32
      $region31: #{cross_spectra_forward.1} parent=27 // pred_region
        _
      $region32: #{cross_spectra_forward.1} parent=27 // pred_fallthru
        _
    $region28: #{cross_spectra_forward.1} parent=5 // pred_fallthru
      _
    %p740 = scmp.le.s32.totalorder 2, %s8
    // Predicated region
    $region33: #{cross_spectra_forward.1} parent=5 // pred_check
      %p741 = pneg %p740
    $region34: #{cross_spectra_forward.1} parent=5 // pred_check_branch
      %743 = sbr.rel (%p741) target = $region36
    $region35: #{cross_spectra_forward.1} parent=5 // pred_region
      %s744 = ssub.s32 %s8, 2
      // Predicated region
      $region37: #{cross_spectra_forward.1} parent=35 // pred_check
        %p745 = pneg %p84
      $region38: #{cross_spectra_forward.1} parent=35 // pred_check_branch
        %747 = sbr.rel (%p745) target = $region40
      $region39: #{cross_spectra_forward.1} parent=35 // pred_region
        %p748 = scmp.lt.s32.totalorder %s14, 1
        %s749 = scalar_select %p748, %s14, 1
        %s750 = smul.addr %s749, 8
        %s751 = smul.addr %s750, 8
        %s752 = scalar_lea.vmem %s2, %s751
      $region40: #{cross_spectra_forward.1} parent=35 // pred_fallthru
        _
    $region36: #{cross_spectra_forward.1} parent=5 // pred_fallthru
      _
  $region6: #{cross_spectra_forward.1} parent=0 // loop_footer
    %s12 = sadd.s32 1, %s8
  $region7: #{cross_spectra_forward.1} parent=0 // loop_footer_branch
    %7 = sbr.rel target = $region3
  $region8: #{cross_spectra_forward.1} parent=0 // loop_exit
    _

</llo_original>
